<compile_context>
chip_gen: v7x
topology: tpu7x:2x2x1
jax: 0.10.0
libtpu: 0.0.40
codegen_flags: <defaults>
</compile_context>

<pallas_src>
import functools

import jax
import jax.numpy as jnp
from jax.experimental import pallas as pl
from jax.experimental.pallas import tpu as pltpu

LN_EPS = 1e-5

_TARGET_STEP_BYTES = 4 << 20   # aim for >= ~4 MiB of streamed HBM per grid step
_MIN_STEP_BYTES = 1 << 20      # don't shrink steps below ~1 MiB when rebalancing
_MAX_BATCH_BLOCK = 32          # static-unroll cap for the batch-blocked path


def _cdiv(a, b):
    return (a + b - 1) // b


def _round_up(a, b):
    return _cdiv(a, b) * b


def _sublane(itemsize):
    # sublane tile: 8 for f32, 16 for bf16, 32 for int8/fp8
    return max(8, 32 // itemsize)


# ---------------------------------------------------------------------------
# Kernel
# ---------------------------------------------------------------------------
def convmlp_kernel(x_ref, w1_ref, p1_ref, w2_ref, b2_ref, o_ref):
    # x_ref : (Cin, T) or (Bblk, Cin, T)  -- pixels on lanes, channels on sublanes
    # w1_ref: (Chid, Cin)   PyTorch 1x1-conv layout (out, in)
    # p1_ref: (Chid, 3)     stacked [b1, ln_gamma, ln_beta]
    # w2_ref: (Cout, Chid)
    # b2_ref: (Cout, 1)
    # o_ref : (Cout, T) or (Bblk, Cout, T)
    w1 = w1_ref[...]
    w2 = w2_ref[...]
    p1 = p1_ref[...].astype(jnp.float32)
    b1 = p1[:, 0:1]
    gamma = p1[:, 1:2]
    beta = p1[:, 2:3]
    b2 = b2_ref[...].astype(jnp.float32)

    def one_image(x):  # x: (Cin, T) lane-dense slab
        # fc1: 1x1 conv == channel-mixing matmul (MXU), f32 accumulate.
        h = jnp.dot(w1, x, preferred_element_type=jnp.float32) + b1   # (Chid, T)
        # LayerNorm over the channel (sublane) axis, single pass, f32.
        inv_c = 1.0 / h.shape[0]
        mean = jnp.sum(h, axis=0, keepdims=True) * inv_c              # (1, T)
        ex2 = jnp.sum(h * h, axis=0, keepdims=True) * inv_c           # (1, T)
        var = jnp.maximum(ex2 - mean * mean, 0.0)                     # clamp cancellation
        inv_std = jax.lax.rsqrt(var + LN_EPS)                         # EUP
        a = jnp.maximum((h - mean) * inv_std * gamma + beta, 0.0)     # ReLU
        # Dropout: identity in eval mode.
        # fc2 (bf16 inputs keep the fast MXU path; f32 inputs stay exact).
        out = jnp.dot(w2, a.astype(w2.dtype), preferred_element_type=jnp.float32)
        return out + b2                                               # (Cout, T)

    if len(x_ref.shape) == 2:
        # Squeezed-batch path: one image per grid step.
        o_ref[...] = one_image(x_ref[...]).astype(o_ref.dtype)
    else:
        # Batch-blocked path: small static unroll, each image stays 2D lane-dense.
        for bi in range(x_ref.shape[0]):
            o_ref[bi] = one_image(x_ref[bi]).astype(o_ref.dtype)


# ---------------------------------------------------------------------------
# Tile / VMEM sizing (chip-aware, padding-aware)
# ---------------------------------------------------------------------------
def _vmem_capacity_bytes():
    try:
        return int(pltpu.get_tpu_info().vmem_capacity_bytes)
    except Exception:
        return 64 << 20        # conservative fallback: v7x per-TensorCore VMEM


def _footprint_bytes(bblk, tile, cin, chid, cout, itemsize):
    """Honest VMEM estimate: sublane/lane padded, double-buffered pipeline blocks
    plus the f32 intermediates held per step."""
    sub = _sublane(itemsize)
    lane = 128
    tl = _round_up(tile, lane)
    cin_s, cout_s, chid_s = (_round_up(c, sub) for c in (cin, cout, chid))
    chid_f = _round_up(chid, 8)                         # f32 intermediates
    fixed = 2 * itemsize * (chid_s * _round_up(cin, lane)
                            + cout_s * _round_up(chid, lane)
                            + chid_s * lane             # p1 (Chid, 3)
                            + cout_s * lane)            # b2 (Cout, 1)
    per_step = bblk * (2 * itemsize * (cin_s + cout_s) * tl       # in/out tiles, 2-buf
                       + 4 * (3 * chid_f + 2 * 8) * tl)           # h / hn / a + stats
    return fixed + per_step


def _choose_tiling(B, P, cin, chid, cout, itemsize, vmem_cap):
    # Generation-aware VMEM budget: 128 MiB chips (v5e/v6e) can spend ~3/4 of
    # capacity (with ~20 MiB headroom); keep the conservative half on 64 MiB v7x.
    if vmem_cap >= (96 << 20):
        budget = min(vmem_cap * 3 // 4, vmem_cap - (20 << 20))
    else:
        budget = vmem_cap // 2

    sub = _sublane(itemsize)
    lane = 128
    cin_s, cout_s, chid_s = (_round_up(c, sub) for c in (cin, cout, chid))
    chid_f = _round_up(chid, 8)
    fixed = 2 * itemsize * (chid_s * _round_up(cin, lane)
                            + cout_s * _round_up(chid, lane)
                            + chid_s * lane + cout_s * lane)
    per_px = 2 * itemsize * (cin_s + cout_s) + 4 * (3 * chid_f + 2 * 8)
    stream_px = (cin + cout) * itemsize            # HBM bytes streamed per pixel

    # 1) Pixel tile sized by bandwidth target (no arbitrary cap), bounded by VMEM.
    tile_vmem = max(lane, (budget - fixed) // max(per_px, 1))
    # TODO(synk): if `fixed` alone exceeds the budget (huge Chid*Cin) a K-tiled
    # reduction axis is needed; the pixel tile just clamps to 128 here.
    tile_bw = _cdiv(_TARGET_STEP_BYTES, max(stream_px, 1))
    tile = min(tile_vmem, tile_bw)
    tile = max(lane, (tile // lane) * lane)
    bblk = 1
    if tile >= P:
        tile = P
        # 2) Per-image pixel count too small to amortize the per-step overhead:
        #    block over batch as well.
        want = _cdiv(_TARGET_STEP_BYTES, max(stream_px * P, 1))
        fit = (budget - fixed) // max(per_px * P, 1)
        bblk = int(max(1, min(B, want, fit, _MAX_BATCH_BLOCK)))

    # 3) Keep >= 2 grid steps so the megacore-parallel axes can feed both v7x
    #    TensorCores (split the step count, not the data).
    if _cdiv(B, bblk) * _cdiv(P, tile) == 1:
        if bblk > 1:
            bblk = _cdiv(bblk, 2)
        elif P > lane:
            tile = _round_up(_cdiv(P, 2), lane)

    # 4) Prefer an even total step count when it costs little (v7x balance).
    steps_b, steps_p = _cdiv(B, bblk), _cdiv(P, tile)
    total = steps_b * steps_p
    if total > 1 and total % 2 == 1 and steps_p > 1 and tile > lane:
        cand = _round_up(_cdiv(P, steps_p + 1), lane)
        if (cand < tile and _cdiv(P, cand) % 2 == 0
                and bblk * stream_px * cand >= _MIN_STEP_BYTES):
            tile = cand
    return bblk, tile


# ---------------------------------------------------------------------------
# Wrapper
# ---------------------------------------------------------------------------
@functools.partial(jax.jit, static_argnames=("bblk", "tile", "vmem_limit"))
def _conv_mlp_impl(x_nchw, w1, b1, ln_g, ln_b, w2, b2, *, bblk, tile, vmem_limit):
    B, Cin, H, W = x_nchw.shape
    Chid = w1.shape[0]
    Cout = w2.shape[0]
    P = H * W

    x3 = x_nchw.reshape(B, Cin, P)              # free view, no transpose / no pad
    p1 = jnp.stack([b1, ln_g, ln_b], axis=1)    # (Chid, 3): one small operand
    b2r = b2.reshape(Cout, 1)

    grid = (_cdiv(B, bblk), _cdiv(P, tile))
    const = lambda b, j: (0, 0)

    if bblk == 1:
        x_spec = pl.BlockSpec((pl.Squeezed(), Cin, tile), lambda b, j: (b, 0, j))
        o_spec = pl.BlockSpec((pl.Squeezed(), Cout, tile), lambda b, j: (b, 0, j))
    else:
        x_spec = pl.BlockSpec((bblk, Cin, tile), lambda b, j: (b, 0, j))
        o_spec = pl.BlockSpec((bblk, Cout, tile), lambda b, j: (b, 0, j))

    out3 = pl.pallas_call(
        convmlp_kernel,
        out_shape=jax.ShapeDtypeStruct((B, Cout, P), x_nchw.dtype),
        grid_spec=pltpu.PrefetchScalarGridSpec(
            num_scalar_prefetch=0,
            grid=grid,
            in_specs=[
                x_spec,
                pl.BlockSpec((Chid, Cin), const),
                pl.BlockSpec((Chid, 3), const),
                pl.BlockSpec((Cout, Chid), const),
                pl.BlockSpec((Cout, 1), const),
            ],
            out_specs=o_spec,
        ),
        compiler_params=pltpu.CompilerParams(
            dimension_semantics=("parallel", "parallel"),
            vmem_limit_bytes=vmem_limit),
    )(x3, w1, p1, w2, b2r)

    return out3.reshape(B, Cout, H, W)          # free view


def conv_mlp(x_nchw, w1, b1, ln_g, ln_b, w2, b2, *, tile=None, batch_block=None):
    """x_nchw: (B, Cin, H, W); w1: (Chid, Cin), w2: (Cout, Chid) (PyTorch 1x1-conv layout)."""
    B, Cin, H, W = x_nchw.shape
    Chid = w1.shape[0]
    Cout = w2.shape[0]
    P = H * W

    vmem_cap = _vmem_capacity_bytes()
    itemsize = jnp.dtype(x_nchw.dtype).itemsize
    if tile is None and batch_block is None:
        bblk, tile = _choose_tiling(B, P, Cin, Chid, Cout, itemsize, vmem_cap)
    else:
        tile = P if tile is None else max(1, min(int(tile), P))
        if tile < P:
            tile = max(128, (tile // 128) * 128)
        bblk = 1 if batch_block is None else max(1, min(int(batch_block), B, _MAX_BATCH_BLOCK))

    fp = _footprint_bytes(bblk, tile, Cin, Chid, Cout, itemsize)
    vmem_limit = int(min(vmem_cap, max(32 << 20, fp + (16 << 20))))
    return _conv_mlp_impl(x_nchw, w1, b1, ln_g, ln_b, w2, b2,
                          bblk=bblk, tile=tile, vmem_limit=vmem_limit)


# ---------------------------------------------------------------------------
# Pure-JAX reference (matches the PyTorch module semantics, eval mode)
# ---------------------------------------------------------------------------
def reference(x_nchw, w1, b1, ln_g, ln_b, w2, b2):
    x = jnp.transpose(x_nchw, (0, 2, 3, 1)).astype(jnp.float32)   # BHWC
    h = jnp.einsum("bhwc,oc->bhwo", x, w1) + b1
    mean = jnp.mean(h, axis=-1, keepdims=True)
    var = jnp.mean((h - mean) ** 2, axis=-1, keepdims=True)
    hn = (h - mean) * jax.lax.rsqrt(var + LN_EPS) * ln_g + ln_b
    a = jnp.maximum(hn, 0.0)
    o = jnp.einsum("bhwc,oc->bhwo", a, w2) + b2
    return jnp.transpose(o, (0, 3, 1, 2))


if __name__ == "__main__":
    # Module semantics: out_channels = hidden_channels = in_channels
    B, Cin, H, W = 2, 4, 16, 16
    Chid, Cout = Cin, Cin

    key = jax.random.PRNGKey(0)
    ks = jax.random.split(key, 6)
    x = jax.random.normal(ks[0], (B, Cin, H, W), dtype=jnp.float32)

    # PyTorch 1x1-conv weight layout: (out, in).
    w1 = jax.random.normal(ks[1], (Chid, Cin), dtype=jnp.float32) * 0.1
    b1 = jax.random.normal(ks[2], (Chid,), dtype=jnp.float32) * 0.1
    w2 = jax.random.normal(ks[3], (Cout, Chid), dtype=jnp.float32) * 0.1
    b2 = jax.random.normal(ks[4], (Cout,), dtype=jnp.float32) * 0.1
    ln_g = jnp.ones((Chid,), dtype=jnp.float32)
    ln_b = jnp.zeros((Chid,), dtype=jnp.float32)

    out = conv_mlp(x, w1, b1, ln_g, ln_b, w2, b2)
    out = jax.block_until_ready(out)

    ref = reference(x, w1, b1, ln_g, ln_b, w2, b2)
    assert out.shape == (B, Cout, H, W)
    assert jnp.allclose(out, ref, atol=2e-5, rtol=2e-5), "mismatch vs reference"

    print("KERNEL_OK")
</pallas_src>

<mosaic_0001>
module attributes {stable_mosaic.version = 11 : i64} {
  func.func @convmlp_kernel(%arg0: i32, %arg1: i32, %arg2: memref<1x4x256xf32, #tpu.memory_space<vmem>>, %arg3: memref<4x4xf32, #tpu.memory_space<vmem>>, %arg4: memref<4x3xf32, #tpu.memory_space<vmem>>, %arg5: memref<4x4xf32, #tpu.memory_space<vmem>>, %arg6: memref<4x1xf32, #tpu.memory_space<vmem>>, %arg7: memref<1x4x256xf32, #tpu.memory_space<vmem>>) attributes {dimension_semantics = [#tpu.dimension_semantics<parallel>, #tpu.dimension_semantics<parallel>], iteration_bounds = array<i64: 2, 1>, scalar_prefetch = 0 : i64, scratch_operands = 0 : i64, tpu.core_type = #tpu.core_type<tc>, window_params = [{transform_indices = @transform_0, window_bounds = array<i64: 1, 4, 256>}, {pipeline_mode = #tpu.pipeline_mode<synchronous>, transform_indices = @transform_1, window_bounds = array<i64: 4, 4>}, {pipeline_mode = #tpu.pipeline_mode<synchronous>, transform_indices = @transform_2, window_bounds = array<i64: 4, 3>}, {pipeline_mode = #tpu.pipeline_mode<synchronous>, transform_indices = @transform_3, window_bounds = array<i64: 4, 4>}, {pipeline_mode = #tpu.pipeline_mode<synchronous>, transform_indices = @transform_4, window_bounds = array<i64: 4, 1>}, {transform_indices = @transform_5, window_bounds = array<i64: 1, 4, 256>}]} {
    %c0 = arith.constant 0 : index
    %c0_0 = arith.constant 0 : index
    %0 = vector.load %arg3[%c0, %c0_0] : memref<4x4xf32, #tpu.memory_space<vmem>>, vector<4x4xf32>
    %c0_1 = arith.constant 0 : index
    %c0_2 = arith.constant 0 : index
    %1 = vector.load %arg5[%c0_1, %c0_2] : memref<4x4xf32, #tpu.memory_space<vmem>>, vector<4x4xf32>
    %c0_3 = arith.constant 0 : index
    %c0_4 = arith.constant 0 : index
    %2 = vector.load %arg4[%c0_3, %c0_4] : memref<4x3xf32, #tpu.memory_space<vmem>>, vector<4x3xf32>
    %3 = vector.extract_strided_slice %2 {offsets = [0, 0], sizes = [4, 1], strides = [1, 1]} : vector<4x3xf32> to vector<4x1xf32>
    %4 = vector.extract_strided_slice %2 {offsets = [0, 1], sizes = [4, 1], strides = [1, 1]} : vector<4x3xf32> to vector<4x1xf32>
    %5 = vector.extract_strided_slice %2 {offsets = [0, 2], sizes = [4, 1], strides = [1, 1]} : vector<4x3xf32> to vector<4x1xf32>
    %c0_5 = arith.constant 0 : index
    %c0_6 = arith.constant 0 : index
    %6 = vector.load %arg6[%c0_5, %c0_6] : memref<4x1xf32, #tpu.memory_space<vmem>>, vector<4x1xf32>
    %c0_7 = arith.constant 0 : index
    %c0_8 = arith.constant 0 : index
    %c0_9 = arith.constant 0 : index
    %7 = vector.load %arg2[%c0_7, %c0_8, %c0_9] : memref<1x4x256xf32, #tpu.memory_space<vmem>>, vector<1x4x256xf32>
    %8 = vector.shape_cast %7 : vector<1x4x256xf32> to vector<4x256xf32>
    %cst = arith.constant dense<0.000000e+00> : vector<4x256xf32>
    %9 = tpu.matmul %0, %8, %cst {dimension_numbers = #tpu.dot_dimension_numbers<[1], [0], [0], [1], [0, 0, 1, 1], [], []>} : vector<4x4xf32>, vector<4x256xf32>, vector<4x256xf32> -> vector<4x256xf32>
    %10 = vector.broadcast %3 : vector<4x1xf32> to vector<4x256xf32>
    %11 = arith.addf %9, %10 : vector<4x256xf32>
    %cst_10 = arith.constant dense<0.000000e+00> : vector<256xf32>
    %12 = vector.multi_reduction <add>, %11, %cst_10 [0] : vector<4x256xf32> to vector<256xf32>
    %13 = vector.shape_cast %12 : vector<256xf32> to vector<1x256xf32>
    %cst_11 = arith.constant 2.500000e-01 : f32
    %14 = vector.broadcast %cst_11 : f32 to vector<1x256xf32>
    %15 = arith.mulf %13, %14 : vector<1x256xf32>
    %16 = arith.mulf %11, %11 : vector<4x256xf32>
    %cst_12 = arith.constant dense<0.000000e+00> : vector<256xf32>
    %17 = vector.multi_reduction <add>, %16, %cst_12 [0] : vector<4x256xf32> to vector<256xf32>
    %18 = vector.shape_cast %17 : vector<256xf32> to vector<1x256xf32>
    %cst_13 = arith.constant 2.500000e-01 : f32
    %19 = vector.broadcast %cst_13 : f32 to vector<1x256xf32>
    %20 = arith.mulf %18, %19 : vector<1x256xf32>
    %21 = arith.mulf %15, %15 : vector<1x256xf32>
    %22 = arith.subf %20, %21 : vector<1x256xf32>
    %cst_14 = arith.constant 0.000000e+00 : f32
    %23 = vector.broadcast %cst_14 : f32 to vector<1x256xf32>
    %24 = arith.maximumf %22, %23 : vector<1x256xf32>
    %cst_15 = arith.constant 9.99999974E-6 : f32
    %25 = vector.broadcast %cst_15 : f32 to vector<1x256xf32>
    %26 = arith.addf %24, %25 : vector<1x256xf32>
    %27 = math.rsqrt %26 : vector<1x256xf32>
    %28 = vector.broadcast %15 : vector<1x256xf32> to vector<4x256xf32>
    %29 = arith.subf %11, %28 : vector<4x256xf32>
    %30 = vector.broadcast %27 : vector<1x256xf32> to vector<4x256xf32>
    %31 = arith.mulf %29, %30 : vector<4x256xf32>
    %32 = vector.broadcast %4 : vector<4x1xf32> to vector<4x256xf32>
    %33 = arith.mulf %31, %32 : vector<4x256xf32>
    %34 = vector.broadcast %5 : vector<4x1xf32> to vector<4x256xf32>
    %35 = arith.addf %33, %34 : vector<4x256xf32>
    %cst_16 = arith.constant 0.000000e+00 : f32
    %36 = vector.broadcast %cst_16 : f32 to vector<4x256xf32>
    %37 = arith.maximumf %35, %36 : vector<4x256xf32>
    %cst_17 = arith.constant dense<0.000000e+00> : vector<4x256xf32>
    %38 = tpu.matmul %1, %37, %cst_17 {dimension_numbers = #tpu.dot_dimension_numbers<[1], [0], [0], [1], [0, 0, 1, 1], [], []>} : vector<4x4xf32>, vector<4x256xf32>, vector<4x256xf32> -> vector<4x256xf32>
    %39 = vector.broadcast %6 : vector<4x1xf32> to vector<4x256xf32>
    %40 = arith.addf %38, %39 : vector<4x256xf32>
    %c0_18 = arith.constant 0 : index
    %c0_19 = arith.constant 0 : index
    %c0_20 = arith.constant 0 : index
    %41 = vector.load %arg7[%c0_18, %c0_19, %c0_20] : memref<1x4x256xf32, #tpu.memory_space<vmem>>, vector<1x4x256xf32>
    %42 = vector.shape_cast %41 : vector<1x4x256xf32> to vector<4x256xf32>
    %43 = vector.shape_cast %40 : vector<4x256xf32> to vector<1x4x256xf32>
    tpu.vector_store %arg7[%c0_18, %c0_19, %c0_20], %43 {strides = array<i32>} : memref<1x4x256xf32, #tpu.memory_space<vmem>>, vector<1x4x256xf32>,
    return
  }
  func.func @transform_0(%arg0: i32, %arg1: i32) -> (i32, i32, i32) {
    %c0_i32 = arith.constant 0 : i32
    %c0_i32_0 = arith.constant 0 : i32
    return %arg0, %c0_i32, %arg1 : i32, i32, i32
  }
  func.func @transform_1(%arg0: i32, %arg1: i32) -> (i32, i32) {
    %c0_i32 = arith.constant 0 : i32
    %c0_i32_0 = arith.constant 0 : i32
    %c0_i32_1 = arith.constant 0 : i32
    return %c0_i32, %c0_i32_0 : i32, i32
  }
  func.func @transform_2(%arg0: i32, %arg1: i32) -> (i32, i32) {
    %c0_i32 = arith.constant 0 : i32
    %c0_i32_0 = arith.constant 0 : i32
    %c0_i32_1 = arith.constant 0 : i32
    return %c0_i32, %c0_i32_0 : i32, i32
  }
  func.func @transform_3(%arg0: i32, %arg1: i32) -> (i32, i32) {
    %c0_i32 = arith.constant 0 : i32
    %c0_i32_0 = arith.constant 0 : i32
    %c0_i32_1 = arith.constant 0 : i32
    return %c0_i32, %c0_i32_0 : i32, i32
  }
  func.func @transform_4(%arg0: i32, %arg1: i32) -> (i32, i32) {
    %c0_i32 = arith.constant 0 : i32
    %c0_i32_0 = arith.constant 0 : i32
    %c0_i32_1 = arith.constant 0 : i32
    return %c0_i32, %c0_i32_0 : i32, i32
  }
  func.func @transform_5(%arg0: i32, %arg1: i32) -> (i32, i32, i32) {
    %c0_i32 = arith.constant 0 : i32
    %c0_i32_0 = arith.constant 0 : i32
    return %arg0, %c0_i32, %arg1 : i32, i32, i32
  }
}

</mosaic_0001>

<llo_original>
// kernel: _conv_mlp_impl.1
$region0: #{_conv_mlp_impl.1}
  #allocation0 [shape = 'u32[]', space=smem, size = 0x4, offset = 0x4, fixed_abs, tag = 'smem constant byte address 0x4 - core index']
  #allocation1 [shape = 'u32[144,128]{1,0:T(1,128)}', space=vmem, size = 0x12000, scoped, tag = 'internal scratch']
  %s0 = inlined_call_operand.vmem [shape: f32[2,4,256], index: 0, kind: input, shape index: {}]
  %s1 = inlined_call_operand.vmem [shape: f32[4,4], index: 1, kind: input, shape index: {}]
  %s2 = inlined_call_operand.vmem [shape: f32[4,3], index: 2, kind: input, shape index: {}]
  %s3 = inlined_call_operand.vmem [shape: f32[4,4], index: 3, kind: input, shape index: {}]
  %s4 = inlined_call_operand.vmem [shape: f32[4,1], index: 4, kind: input, shape index: {}]
  %s5 = inlined_call_operand.vmem [shape: f32[2,4,256], index: 5, kind: output, shape index: {}]
  %s6 = sld [smem:[#allocation0]]
  $region53: #{_conv_mlp_impl.1} parent=0
    _
  %s8 = ssub.s32 1, %s6
  %s9 = scalar_select 0, %s8, %s6
  loop: start=0, step=1, limit=4
  $region2: #{_conv_mlp_impl.1} parent=0 // loop_pre_header
    _
  $region3: #{_conv_mlp_impl.1} parent=0 // loop_header
    %s11 = sphi 0, %s15
    %p12 = scmp.ge.s32.totalorder %s11, 4
    %s18 = sphi 0, %s30
    %s19 = sphi 0, %s26
    %s20 = sphi 0, %s18
    %s21 = sphi 0, %s19
    %s22 = sphi 0, %s20
    %s23 = sphi 0, %s21
    %s35 = sphi 0, %s37
    %s38 = sphi 0, %s35
    %s39 = sphi 0, %s38
    %s55 = sphi 0, %s39
    %s59 = sphi 0, %s59
    %s61 = sphi 0, %s59
    %s62 = sphi 0, %s61
    %s76 = sphi 0, %s62
    %s80 = sphi 0, %s80
    %s82 = sphi 0, %s80
    %s83 = sphi 0, %s82
    %s97 = sphi 0, %s83
    %s101 = sphi 0, %s101
    %s103 = sphi 0, %s101
    %s104 = sphi 0, %s103
    %s118 = sphi 0, %s104
    %s122 = sphi 0, %s122
    %s124 = sphi 0, %s122
    %s125 = sphi 0, %s124
    %s139 = sphi 0, %s125
    %s147 = sphi 0, %s149
    %s150 = sphi 0, %s147
    %s151 = sphi 0, %s150
    %s167 = sphi 0, %s151
  $region4: #{_conv_mlp_impl.1} parent=0 // loop_header_branch
    %14 = sbr.rel (%p12) target = $region8
  $region5: #{_conv_mlp_impl.1} parent=0 // loop_body
    %s16 = ssub.s32 %s11, 1
    %s17 = ssub.s32 %s11, 2
    %s24 = sadd.s32 1, %s19
    %p25 = scmp.ge.s32.totalorder %s24, 1
    %s26 = scalar_select %p25, 0, %s24
    %s27 = sadd.s32 1, %s18
    %s28 = scalar_select %p25, %s27, %s18
    %p29 = scmp.ge.s32.totalorder %s28, 2
    %s30 = scalar_select %p29, 0, %s28
    %s31 = ssub.s32 %s18, %s30
    %s32 = ssub.s32 %s19, %s26
    %s33 = sor.u32 %s31, %s32
    %p34 = scmp.eq.s32.totalorder %s33, 0
    %s36 = sadd.s32 %s35, 1
    %s37 = scalar_select %p34, %s35, %s36
    %p40 = pneg %p34
    %p41 = scmp.eq.s32.totalorder %s11, 1
    %p42 = por %p40, %p41
    %p43 = scmp.ne.s32.totalorder %s35, %s38
    %p44 = scmp.eq.s32.totalorder %s11, 0
    %p45 = por %p43, %p44
    %p46 = scmp.ne.s32.totalorder %s35, %s38
    %p47 = scmp.eq.s32.totalorder %s16, 1
    %p48 = por %p46, %p47
    %p49 = scmp.ne.s32.totalorder %s38, %s39
    %p50 = scmp.eq.s32.totalorder %s16, 0
    %p51 = por %p49, %p50
    %p52 = scmp.ne.s32.totalorder %s38, %s39
    %p53 = scmp.eq.s32.totalorder %s17, 1
    %p54 = por %p52, %p53
    %p56 = scmp.ne.s32.totalorder %s39, %s55
    %p57 = scmp.eq.s32.totalorder %s17, 0
    %p58 = por %p56, %p57
    %s60 = sadd.s32 %s59, 1
    %p63 = scmp.eq.s32.totalorder %s11, 1
    %p64 = scmp.ne.s32.totalorder %s59, %s61
    %p65 = scmp.eq.s32.totalorder %s11, 0
    %p66 = por %p64, %p65
    %p67 = scmp.ne.s32.totalorder %s59, %s61
    %p68 = scmp.eq.s32.totalorder %s16, 1
    %p69 = por %p67, %p68
    %p70 = scmp.ne.s32.totalorder %s61, %s62
    %p71 = scmp.eq.s32.totalorder %s16, 0
    %p72 = por %p70, %p71
    %p73 = scmp.ne.s32.totalorder %s61, %s62
    %p74 = scmp.eq.s32.totalorder %s17, 1
    %p75 = por %p73, %p74
    %p77 = scmp.ne.s32.totalorder %s62, %s76
    %p78 = scmp.eq.s32.totalorder %s17, 0
    %p79 = por %p77, %p78
    %s81 = sadd.s32 %s80, 1
    %p84 = scmp.eq.s32.totalorder %s11, 1
    %p85 = scmp.ne.s32.totalorder %s80, %s82
    %p86 = scmp.eq.s32.totalorder %s11, 0
    %p87 = por %p85, %p86
    %p88 = scmp.ne.s32.totalorder %s80, %s82
    %p89 = scmp.eq.s32.totalorder %s16, 1
    %p90 = por %p88, %p89
    %p91 = scmp.ne.s32.totalorder %s82, %s83
    %p92 = scmp.eq.s32.totalorder %s16, 0
    %p93 = por %p91, %p92
    %p94 = scmp.ne.s32.totalorder %s82, %s83
    %p95 = scmp.eq.s32.totalorder %s17, 1
    %p96 = por %p94, %p95
    %p98 = scmp.ne.s32.totalorder %s83, %s97
    %p99 = scmp.eq.s32.totalorder %s17, 0
    %p100 = por %p98, %p99
    %s102 = sadd.s32 %s101, 1
    %p105 = scmp.eq.s32.totalorder %s11, 1
    %p106 = scmp.ne.s32.totalorder %s101, %s103
    %p107 = scmp.eq.s32.totalorder %s11, 0
    %p108 = por %p106, %p107
    %p109 = scmp.ne.s32.totalorder %s101, %s103
    %p110 = scmp.eq.s32.totalorder %s16, 1
    %p111 = por %p109, %p110
    %p112 = scmp.ne.s32.totalorder %s103, %s104
    %p113 = scmp.eq.s32.totalorder %s16, 0
    %p114 = por %p112, %p113
    %p115 = scmp.ne.s32.totalorder %s103, %s104
    %p116 = scmp.eq.s32.totalorder %s17, 1
    %p117 = por %p115, %p116
    %p119 = scmp.ne.s32.totalorder %s104, %s118
    %p120 = scmp.eq.s32.totalorder %s17, 0
    %p121 = por %p119, %p120
    %s123 = sadd.s32 %s122, 1
    %p126 = scmp.eq.s32.totalorder %s11, 1
    %p127 = scmp.ne.s32.totalorder %s122, %s124
    %p128 = scmp.eq.s32.totalorder %s11, 0
    %p129 = por %p127, %p128
    %p130 = scmp.ne.s32.totalorder %s122, %s124
    %p131 = scmp.eq.s32.totalorder %s16, 1
    %p132 = por %p130, %p131
    %p133 = scmp.ne.s32.totalorder %s124, %s125
    %p134 = scmp.eq.s32.totalorder %s16, 0
    %p135 = por %p133, %p134
    %p136 = scmp.ne.s32.totalorder %s124, %s125
    %p137 = scmp.eq.s32.totalorder %s17, 1
    %p138 = por %p136, %p137
    %p140 = scmp.ne.s32.totalorder %s125, %s139
    %p141 = scmp.eq.s32.totalorder %s17, 0
    %p142 = por %p140, %p141
    %s143 = ssub.s32 %s18, %s30
    %s144 = ssub.s32 %s19, %s26
    %s145 = sor.u32 %s143, %s144
    %p146 = scmp.eq.s32.totalorder %s145, 0
    %s148 = sadd.s32 %s147, 1
    %s149 = scalar_select %p146, %s147, %s148
    %p152 = pneg %p146
    %p153 = scmp.eq.s32.totalorder %s11, 1
    %p154 = por %p152, %p153
    %p155 = scmp.ne.s32.totalorder %s147, %s150
    %p156 = scmp.eq.s32.totalorder %s11, 0
    %p157 = por %p155, %p156
    %p158 = scmp.ne.s32.totalorder %s147, %s150
    %p159 = scmp.eq.s32.totalorder %s16, 1
    %p160 = por %p158, %p159
    %p161 = scmp.ne.s32.totalorder %s150, %s151
    %p162 = scmp.eq.s32.totalorder %s16, 0
    %p163 = por %p161, %p162
    %p164 = scmp.ne.s32.totalorder %s150, %s151
    %p165 = scmp.eq.s32.totalorder %s17, 1
    %p166 = por %p164, %p165
    %p168 = scmp.ne.s32.totalorder %s151, %s167
    %p169 = scmp.eq.s32.totalorder %s17, 0
    %p170 = por %p168, %p169
    %p171 = scmp.le.s32.totalorder 1, %s11
    %p172 = scmp.lt.s32.totalorder %s11, 3
    %p173 = pnand %p171, %p172
    %p174 = pneg %p173
    // Predicated region
    $region9: #{_conv_mlp_impl.1} parent=5 // pred_check
      _
    $region10: #{_conv_mlp_impl.1} parent=5 // pred_check_branch
      %176 = sbr.rel (%p173) target = $region12
    $region11: #{_conv_mlp_impl.1} parent=5 // pred_region
      %s177 = ssub.s32 %s11, 1
      // Predicated region
      $region13: #{_conv_mlp_impl.1} parent=11 // pred_check
        %p178 = pneg %p72
      $region14: #{_conv_mlp_impl.1} parent=11 // pred_check_branch
        %180 = sbr.rel (%p178) target = $region16
      $region15: #{_conv_mlp_impl.1} parent=11 // pred_region
        _
      $region16: #{_conv_mlp_impl.1} parent=11 // pred_fallthru
        _
      // Predicated region
      $region17: #{_conv_mlp_impl.1} parent=11 // pred_check
        %p181 = pneg %p93
      $region18: #{_conv_mlp_impl.1} parent=11 // pred_check_branch
        %183 = sbr.rel (%p181) target = $region20
      $region19: #{_conv_mlp_impl.1} parent=11 // pred_region
        _
      $region20: #{_conv_mlp_impl.1} parent=11 // pred_fallthru
        _
      // Predicated region
      $region21: #{_conv_mlp_impl.1} parent=11 // pred_check
        %p184 = pneg %p114
      $region22: #{_conv_mlp_impl.1} parent=11 // pred_check_branch
        %186 = sbr.rel (%p184) target = $region24
      $region23: #{_conv_mlp_impl.1} parent=11 // pred_region
        _
      $region24: #{_conv_mlp_impl.1} parent=11 // pred_fallthru
        _
      // Predicated region
      $region25: #{_conv_mlp_impl.1} parent=11 // pred_check
        %p187 = pneg %p135
      $region26: #{_conv_mlp_impl.1} parent=11 // pred_check_branch
        %189 = sbr.rel (%p187) target = $region28
      $region27: #{_conv_mlp_impl.1} parent=11 // pred_region
        _
      $region28: #{_conv_mlp_impl.1} parent=11 // pred_fallthru
        _
    $region12: #{_conv_mlp_impl.1} parent=5 // pred_fallthru
      _
    %p190 = scmp.lt.s32.totalorder %s11, 2
    // Predicated region
    $region29: #{_conv_mlp_impl.1} parent=5 // pred_check
      %p191 = pneg %p190
    $region30: #{_conv_mlp_impl.1} parent=5 // pred_check_branch
      %193 = sbr.rel (%p191) target = $region32
    $region31: #{_conv_mlp_impl.1} parent=5 // pred_region
      // Predicated region
      $region33: #{_conv_mlp_impl.1} parent=31 // pred_check
        %p194 = pneg %p45
      $region34: #{_conv_mlp_impl.1} parent=31 // pred_check_branch
        %196 = sbr.rel (%p194) target = $region36
      $region35: #{_conv_mlp_impl.1} parent=31 // pred_region
        %s197 = smul.u32 2, %s19
        %p198 = scmp.lt.s32.totalorder %s18, 1
        %s199 = scalar_select %p198, %s18, 1
        %p200 = scmp.lt.s32.totalorder %s197, 1
        %s201 = scalar_select %p200, %s197, 1
        %s202 = smul.addr %s199, 2
        %s203 = sadd.s32 %s201, %s202
        %s204 = smul.addr %s203, 4
        %s205 = scalar_lea.vmem %s0, %s204
        %s206 = smul.u32 2, %s19
      $region36: #{_conv_mlp_impl.1} parent=31 // pred_fallthru
        _
    $region32: #{_conv_mlp_impl.1} parent=5 // pred_fallthru
      _
    %p207 = scmp.le.s32.totalorder 1, %s11
    %p208 = scmp.lt.s32.totalorder %s11, 3
    %p209 = pnand %p207, %p208
    %p210 = pneg %p209
    // Predicated region
    $region37: #{_conv_mlp_impl.1} parent=5 // pred_check
      _
    $region38: #{_conv_mlp_impl.1} parent=5 // pred_check_branch
      %212 = sbr.rel (%p209) target = $region40
    $region39: #{_conv_mlp_impl.1} parent=5 // pred_region
      %s213 = ssub.s32 %s11, 1
      %s214 = smul.u32 2, %s21
      %p215 = scmp.lt.s32.totalorder %s20, 1
      %s216 = scalar_select %p215, %s20, 1
      %p217 = scmp.lt.s32.totalorder %s214, 1
      %s218 = scalar_select %p217, %s214, 1
      %s219 = smul.addr %s216, 2
      %s220 = sadd.s32 %s218, %s219
      %s221 = smul.addr %s220, 4
      %s222 = scalar_lea.vmem %s0, %s221
      %p223 = pneg %p51
      %p224 = pneg %p48
      %p225 = pneg %p72
      %p226 = pneg %p69
      %p227 = pneg %p93
      %p228 = pneg %p90
      %p229 = pneg %p114
      %p230 = pneg %p111
      %p231 = pneg %p135
      %p232 = pneg %p132
      %p233 = pneg %p163
      %p234 = pneg %p160
      %s235 = smul.u32 2, %s21
      %p236 = scmp.lt.s32.totalorder %s20, 1
      %s237 = scalar_select %p236, %s20, 1
      %p238 = scmp.lt.s32.totalorder %s235, 1
      %s239 = scalar_select %p238, %s235, 1
      %s240 = smul.addr %s237, 2
      %s241 = sadd.s32 %s239, %s240
      %s242 = smul.addr %s241, 4
      %s243 = scalar_lea.vmem %s5, %s242
      %s244 = smul.u32 2, %s21
      %p245 = scmp.lt.s32.totalorder %s20, 1
      %s246 = scalar_select %p245, %s20, 1
      %p247 = scmp.lt.s32.totalorder %s244, 1
      %s248 = scalar_select %p247, %s244, 1
      %s249 = smul.addr %s246, 2
      %s250 = sadd.s32 %s248, %s249
      %s251 = smul.addr %s250, 4
      %s252 = scalar_lea.vmem %s0, %s251
      %s253 = smul.u32 2, %s21
      %s254 = smul.u32 2, %s21
      %p255 = scmp.lt.s32.totalorder %s20, 1
      %s256 = scalar_select %p255, %s20, 1
      %p257 = scmp.lt.s32.totalorder %s254, 1
      %s258 = scalar_select %p257, %s254, 1
      %s259 = smul.addr %s256, 2
      %s260 = sadd.s32 %s258, %s259
      %s261 = smul.addr %s260, 4
      %s262 = scalar_lea.vmem %s5, %s261
      %s263 = smul.u32 2, %s21
      %v264 = vld [vmem:[%s1] sm:$0xf]
      %v265 = vld [vmem:[%s3] sm:$0xf]
      %v266 = vld [vmem:[%s2] sm:$0xf]
      %v267 = vld [vmem:[%s4] sm:$0xf]
      %v268 = vld [vmem:[%s252] sm:$0xff]
      %270 = vset.pattern.permute.xlu0 0
      %271 = vperm.xlu0 %270, %v266
      %v272 = vpop.permute.xlu0 %271
      %v275 = vcombine.high %v268, %v268
      %vm276 = vcmask 31744
      %v278 = vsel %vm276, %v264, 0
      %vm280 = vcmask 1043456
      %v281 = vsel %vm280, %v268, 0
      %v283 = vsel %vm280, %v275, 0
      %285 = vmatprep.subr.mxu0 %v283
      %286 = vmatpush1.msra.mxu0 %v281
      %287 = vmatprep.subr.mxu0 0.0
      %288 = vmatpush1.msra.mxu0 0.0
      %289 = vmatprep.subr.mxu0 0.0
      %290 = vmatpush1.msra.mxu0 0.0
      %291 = vmatprep.subr.mxu0 0.0
      %292 = vmatpush1.msra.mxu0 0.0
      %293 = vmatprep.subr.mxu0 0.0
      %294 = vmatpush1.msra.mxu0 0.0
      %295 = vmatprep.subr.mxu0 0.0
      %296 = vmatpush1.msra.mxu0 0.0
      %297 = vmatprep.subr.mxu0 0.0
      %298 = vmatpush1.msra.mxu0 0.0
      %299 = vmatprep.subr.mxu0 0.0
      %300 = vmatpush1.msra.mxu0 0.0
      %301 = vmatprep.subr.mxu0 0.0
      %302 = vmatpush1.msra.mxu0 0.0
      %303 = vmatprep.subr.mxu0 0.0
      %304 = vmatpush1.msra.mxu0 0.0
      %305 = vmatprep.subr.mxu0 0.0
      %306 = vmatpush1.msra.mxu0 0.0
      %307 = vmatprep.subr.mxu0 0.0
      %308 = vmatpush1.msra.mxu0 0.0
      %309 = vmatprep.subr.mxu0 0.0
      %310 = vmatpush1.msra.mxu0 0.0
      %311 = vmatprep.subr.mxu0 0.0
      %312 = vmatpush1.msra.mxu0 0.0
      %313 = vmatprep.subr.mxu0 0.0
      %314 = vmatpush1.msra.mxu0 0.0
      %315 = vmatprep.subr.mxu0 0.0
      %316 = vmatpush1.msra.mxu0 0.0
      %317 = vmatprep.subr.mxu0 0.0
      %318 = vmatpush1.msra.mxu0 0.0
      %319 = vmatprep.subr.mxu0 0.0
      %320 = vmatpush1.msra.mxu0 0.0
      %321 = vmatprep.subr.mxu0 0.0
      %322 = vmatpush1.msra.mxu0 0.0
      %323 = vmatprep.subr.mxu0 0.0
      %324 = vmatpush1.msra.mxu0 0.0
      %325 = vmatprep.subr.mxu0 0.0
      %326 = vmatpush1.msra.mxu0 0.0
      %327 = vmatprep.subr.mxu0 0.0
      %328 = vmatpush1.msra.mxu0 0.0
      %329 = vmatprep.subr.mxu0 0.0
      %330 = vmatpush1.msra.mxu0 0.0
      %331 = vmatprep.subr.mxu0 0.0
      %332 = vmatpush1.msra.mxu0 0.0
      %333 = vmatprep.subr.mxu0 0.0
      %334 = vmatpush1.msra.mxu0 0.0
      %335 = vmatprep.subr.mxu0 0.0
      %336 = vmatpush1.msra.mxu0 0.0
      %337 = vmatprep.subr.mxu0 0.0
      %338 = vmatpush1.msra.mxu0 0.0
      %339 = vmatprep.subr.mxu0 0.0
      %340 = vmatpush1.msra.mxu0 0.0
      %341 = vmatprep.subr.mxu0 0.0
      %342 = vmatpush1.msra.mxu0 0.0
      %343 = vmatprep.subr.mxu0 0.0
      %344 = vmatpush1.msra.mxu0 0.0
      %345 = vmatprep.subr.mxu0 0.0
      %346 = vmatpush1.msra.mxu0 0.0
      %347 = vmatprep.subr.mxu0 0.0
      %348 = vmatpush1.msra.mxu0 0.0
      %349 = vmatprep.mubr.f32.mxu0 0.0
      %350 = vmatmul.mubr.f32.gmra.mrb[0].mxu0 %v278
      %v351 = vpop.f32.mrb[0].mxu0
      %v352 = vadd.f32 %v272, %v351
      %v353 = vpop.f32.mrb[0].mxu0
      %v354 = vadd.f32 %v272, %v353
      %355 = vdwg.mxu0
      %v356 = vsel %vm280, %v352, 0.0
      %v357 = vrot.slane %v356, 4
      %v358 = vadd.f32 %v356, %v357
      %v359 = vrot.slane %v358, 2
      %v360 = vadd.f32 %v358, %v359
      %v361 = vrot.slane %v360, 1
      %v362 = vadd.f32 %v360, %v361
      %v363 = vsel %vm280, %v354, 0.0
      %v364 = vrot.slane %v363, 4
      %v365 = vadd.f32 %v363, %v364
      %v366 = vrot.slane %v365, 2
      %v367 = vadd.f32 %v365, %v366
      %v368 = vrot.slane %v367, 1
      %v369 = vadd.f32 %v367, %v368
      %v370 = vmul.f32 %v362, 0.25
      %v371 = vmul.f32 %v369, 0.25
      %v372 = vmul.f32 %v352, %v352
      %v373 = vmul.f32 %v354, %v354
      %v374 = vsel %vm280, %v372, 0.0
      %v375 = vrot.slane %v374, 4
      %v376 = vadd.f32 %v374, %v375
      %v377 = vrot.slane %v376, 2
      %v378 = vadd.f32 %v376, %v377
      %v379 = vrot.slane %v378, 1
      %v380 = vadd.f32 %v378, %v379
      %v381 = vsel %vm280, %v373, 0.0
      %v382 = vrot.slane %v381, 4
      %v383 = vadd.f32 %v381, %v382
      %v384 = vrot.slane %v383, 2
      %v385 = vadd.f32 %v383, %v384
      %v386 = vrot.slane %v385, 1
      %v387 = vadd.f32 %v385, %v386
      %v388 = vmul.f32 %v380, 0.25
      %v389 = vmul.f32 %v387, 0.25
      %v390 = vmul.f32 %v370, %v370
      %v391 = vmul.f32 %v371, %v371
      %v392 = vsub.f32 %v388, %v390
      %v393 = vsub.f32 %v389, %v391
      %v394 = vmax.f32 %v392, 0.0
      %v395 = vmax.f32 %v393, 0.0
      %v396 = vadd.f32 %v394, 1e-05
      %v397 = vadd.f32 %v395, 1e-05
      %v398 = vrsqrt.pop %v396
      %v399 = vrsqrt.pop %v397
      %v400 = vsub.f32 %v352, %v370
      %v401 = vsub.f32 %v354, %v371
      %v402 = vmul.f32 %v400, %v398
      %v403 = vmul.f32 %v401, %v399
      %404 = vset.pattern.permute.xlu0 1
      %405 = vperm.xlu0 %404, %v266
      %v406 = vpop.permute.xlu0 %405
      %v408 = vmul.f32 %v402, %v406
      %v409 = vmul.f32 %v403, %v406
      %410 = vset.pattern.permute.xlu0 2
      %411 = vperm.xlu0 %410, %v266
      %v412 = vpop.permute.xlu0 %411
      %v414 = vadd.f32 %v408, %v412
      %v415 = vadd.f32 %v409, %v412
      %v416 = vmax.f32 %v414, 0.0
      %v417 = vmax.f32 %v415, 0.0
      %419 = vset.pattern.permute.xlu0 0
      %420 = vperm.xlu0 %419, %v267
      %v421 = vpop.permute.xlu0 %420
      %v424 = vsel %vm276, %v265, 0
      %v427 = vsel %vm280, %v416, 0
      %v430 = vsel %vm280, %v417, 0
      %432 = vmatprep.subr.mxu0 %v430
      %433 = vmatpush1.msra.mxu0 %v427
      %434 = vmatprep.subr.mxu0 0.0
      %435 = vmatpush1.msra.mxu0 0.0
      %436 = vmatprep.subr.mxu0 0.0
      %437 = vmatpush1.msra.mxu0 0.0
      %438 = vmatprep.subr.mxu0 0.0
      %439 = vmatpush1.msra.mxu0 0.0
      %440 = vmatprep.subr.mxu0 0.0
      %441 = vmatpush1.msra.mxu0 0.0
      %442 = vmatprep.subr.mxu0 0.0
      %443 = vmatpush1.msra.mxu0 0.0
      %444 = vmatprep.subr.mxu0 0.0
      %445 = vmatpush1.msra.mxu0 0.0
      %446 = vmatprep.subr.mxu0 0.0
      %447 = vmatpush1.msra.mxu0 0.0
      %448 = vmatprep.subr.mxu0 0.0
      %449 = vmatpush1.msra.mxu0 0.0
      %450 = vmatprep.subr.mxu0 0.0
      %451 = vmatpush1.msra.mxu0 0.0
      %452 = vmatprep.subr.mxu0 0.0
      %453 = vmatpush1.msra.mxu0 0.0
      %454 = vmatprep.subr.mxu0 0.0
      %455 = vmatpush1.msra.mxu0 0.0
      %456 = vmatprep.subr.mxu0 0.0
      %457 = vmatpush1.msra.mxu0 0.0
      %458 = vmatprep.subr.mxu0 0.0
      %459 = vmatpush1.msra.mxu0 0.0
      %460 = vmatprep.subr.mxu0 0.0
      %461 = vmatpush1.msra.mxu0 0.0
      %462 = vmatprep.subr.mxu0 0.0
      %463 = vmatpush1.msra.mxu0 0.0
      %464 = vmatprep.subr.mxu0 0.0
      %465 = vmatpush1.msra.mxu0 0.0
      %466 = vmatprep.subr.mxu0 0.0
      %467 = vmatpush1.msra.mxu0 0.0
      %468 = vmatprep.subr.mxu0 0.0
      %469 = vmatpush1.msra.mxu0 0.0
      %470 = vmatprep.subr.mxu0 0.0
      %471 = vmatpush1.msra.mxu0 0.0
      %472 = vmatprep.subr.mxu0 0.0
      %473 = vmatpush1.msra.mxu0 0.0
      %474 = vmatprep.subr.mxu0 0.0
      %475 = vmatpush1.msra.mxu0 0.0
      %476 = vmatprep.subr.mxu0 0.0
      %477 = vmatpush1.msra.mxu0 0.0
      %478 = vmatprep.subr.mxu0 0.0
      %479 = vmatpush1.msra.mxu0 0.0
      %480 = vmatprep.subr.mxu0 0.0
      %481 = vmatpush1.msra.mxu0 0.0
      %482 = vmatprep.subr.mxu0 0.0
      %483 = vmatpush1.msra.mxu0 0.0
      %484 = vmatprep.subr.mxu0 0.0
      %485 = vmatpush1.msra.mxu0 0.0
      %486 = vmatprep.subr.mxu0 0.0
      %487 = vmatpush1.msra.mxu0 0.0
      %488 = vmatprep.subr.mxu0 0.0
      %489 = vmatpush1.msra.mxu0 0.0
      %490 = vmatprep.subr.mxu0 0.0
      %491 = vmatpush1.msra.mxu0 0.0
      %492 = vmatprep.subr.mxu0 0.0
      %493 = vmatpush1.msra.mxu0 0.0
      %494 = vmatprep.subr.mxu0 0.0
      %495 = vmatpush1.msra.mxu0 0.0
      %496 = vmatprep.mubr.f32.mxu0 0.0
      %497 = vmatmul.mubr.f32.gmra.mrb[0].mxu0 %v424
      %v498 = vpop.f32.mrb[0].mxu0
      %v499 = vadd.f32 %v421, %v498
      %v500 = vpop.f32.mrb[0].mxu0
      %v501 = vadd.f32 %v421, %v500
      %502 = vdwg.mxu0
      %v505 = vcombine.low %v499, %v501
      %507 = vst [vmem:[%s262] sm:$0xff] %v505
      %s508 = smul.u32 2, %s21
      %p509 = scmp.lt.s32.totalorder %s20, 1
      %s510 = scalar_select %p509, %s20, 1
      %p511 = scmp.lt.s32.totalorder %s508, 1
      %s512 = scalar_select %p511, %s508, 1
      %s513 = smul.addr %s510, 2
      %s514 = sadd.s32 %s512, %s513
      %s515 = smul.addr %s514, 4
      %s516 = scalar_lea.vmem %s5, %s515
      // Predicated region
      $region41: #{_conv_mlp_impl.1} parent=39 // pred_check
        %p517 = pneg %p160
      $region42: #{_conv_mlp_impl.1} parent=39 // pred_check_branch
        %519 = sbr.rel (%p517) target = $region44
      $region43: #{_conv_mlp_impl.1} parent=39 // pred_region
        %s520 = smul.u32 2, %s21
      $region44: #{_conv_mlp_impl.1} parent=39 // pred_fallthru
        _
    $region40: #{_conv_mlp_impl.1} parent=5 // pred_fallthru
      _
    %p521 = scmp.le.s32.totalorder 2, %s11
    // Predicated region
    $region45: #{_conv_mlp_impl.1} parent=5 // pred_check
      %p522 = pneg %p521
    $region46: #{_conv_mlp_impl.1} parent=5 // pred_check_branch
      %524 = sbr.rel (%p522) target = $region48
    $region47: #{_conv_mlp_impl.1} parent=5 // pred_region
      %s525 = ssub.s32 %s11, 2
      // Predicated region
      $region49: #{_conv_mlp_impl.1} parent=47 // pred_check
        %p526 = pneg %p166
      $region50: #{_conv_mlp_impl.1} parent=47 // pred_check_branch
        %528 = sbr.rel (%p526) target = $region52
      $region51: #{_conv_mlp_impl.1} parent=47 // pred_region
        %s529 = smul.u32 2, %s23
        %p530 = scmp.lt.s32.totalorder %s22, 1
        %s531 = scalar_select %p530, %s22, 1
        %p532 = scmp.lt.s32.totalorder %s529, 1
        %s533 = scalar_select %p532, %s529, 1
        %s534 = smul.addr %s531, 2
        %s535 = sadd.s32 %s533, %s534
        %s536 = smul.addr %s535, 4
        %s537 = scalar_lea.vmem %s5, %s536
      $region52: #{_conv_mlp_impl.1} parent=47 // pred_fallthru
        _
    $region48: #{_conv_mlp_impl.1} parent=5 // pred_fallthru
      _
  $region6: #{_conv_mlp_impl.1} parent=0 // loop_footer
    %s15 = sadd.s32 1, %s11
  $region7: #{_conv_mlp_impl.1} parent=0 // loop_footer_branch
    %10 = sbr.rel target = $region3
  $region8: #{_conv_mlp_impl.1} parent=0 // loop_exit
    _

</llo_original>
